<compile_context>
chip_gen: v7x
topology: tpu7x:2x2x1
jax: 0.10.0
libtpu: 0.0.40
codegen_flags: <defaults>
</compile_context>

<pallas_src>
import functools

import jax
import jax.numpy as jnp
from jax import lax
from jax.experimental import pallas as pl
from jax.experimental.pallas import tpu as pltpu


def _mha_kernel(q_ref, k_ref, v_ref, adjT_ref, out_ref, z_sc, wv_sc, *,
                num_heads, head_dim, possible_empty, score_dtype):
    """One (dst-tile, src-tile) grid step of masked multi-head graph attention."""
    ks = pl.program_id(1)                      # src-tile (reduction) index

    @pl.when(ks == 0)
    def _init():
        z_sc[...] = jnp.zeros_like(z_sc)
        wv_sc[...] = jnp.zeros_like(wv_sc)

    adj = adjT_ref[...].astype(jnp.float32)    # [td, ts] 0/1 edge mask, dst-major
    q = q_ref[...]                             # [td, H*D]  (already scaled by 1/sqrt(D))
    k = k_ref[...]                             # [ts, H*D]
    v = v_ref[...]                             # [ts, H*D]

    for hh in range(num_heads):                # static unroll over heads
        lo, hi = hh * head_dim, (hh + 1) * head_dim
        qh = q[:, lo:hi]                       # [td, D]
        kh = k[:, lo:hi]                       # [ts, D]
        vh = v[:, lo:hi]                       # [ts, D]
        # dst-major scores: s[d, u] = Q_h[d] . K_h[u] / sqrt(D); no [N, N] transpose anywhere.
        s = lax.dot_general(qh, kh, (((1,), (1,)), ((), ())),
                            preferred_element_type=jnp.float32)         # [td, ts]
        # exp on the EUP; bf16 on v6e/v7x (score_dtype), f32 on v5e.
        e = jnp.exp(jnp.clip(s, -5.0, 5.0).astype(score_dtype))
        score = e.astype(jnp.float32) * adj                              # masked, f32
        # z reduction on the XLU (lane reduce); accumulate in place, no concatenates.
        z_sc[:, hh:hh + 1] += jnp.sum(score, axis=-1, keepdims=True)
        # TODO(synk): fold z into the MXU (ones column appended to V) if the XLU ever becomes
        # the binding unit at very small head_dim.
        wv_sc[:, lo:hi] += jnp.dot(score.astype(vh.dtype), vh,
                                   preferred_element_type=jnp.float32)

    @pl.when(ks == pl.num_programs(1) - 1)
    def _finalize():
        for hh in range(num_heads):
            lo, hi = hh * head_dim, (hh + 1) * head_dim
            zc = z_sc[:, hh:hh + 1]
            if possible_empty:
                # empty destination => z == 0 and wV == 0; safe divide keeps 0 without NaN
                zc = jnp.where(zc > 0.0, zc, 1.0)
            out_ref[:, lo:hi] = (wv_sc[:, lo:hi] / zc).astype(out_ref.dtype)


def _auto_score_dtype(compute_dtype):
    """bf16 exp only where the EUP supports it (v6e / v7x); f32 otherwise."""
    if jnp.dtype(compute_dtype) == jnp.dtype(jnp.float32):
        return jnp.float32
    try:
        kind = jax.devices()[0].device_kind.lower()
    except Exception:
        return jnp.float32
    if any(tag in kind for tag in ("v2", "v3", "v4", "v5")):
        return jnp.float32          # no bf16 EUP/VPU before v6
    return jnp.bfloat16


def mha_forward(h, adj, Wq, bq, Wk, bk, Wv, bv, *, possible_empty=True,
                compute_dtype=jnp.bfloat16, score_dtype=None):
    """h: [N, in_dim]; adj: [N_src, N_dst] (adj[u, v] = 1 iff edge u -> v);
    Wq/Wk/Wv: [H, in_dim, D]; bq/bk/bv: [H, 1, D].  Returns [N, H, D] (== torch head_out)."""
    N, in_dim = h.shape
    H, _, D = Wq.shape
    HD = H * D
    inv_sqrt_d = 1.0 / (float(D) ** 0.5)
    if score_dtype is None:
        score_dtype = _auto_score_dtype(compute_dtype)

    # ---- projections hoisted out of the kernel: one XLA GEMM each over all heads ----
    def proj(W, b):     # [H, in_dim, D], [H, 1, D] -> [N, H*D] (head-major columns)
        W2 = jnp.transpose(W, (1, 0, 2)).reshape(in_dim, HD)
        b2 = b.reshape(1, HD)
        return jnp.dot(h, W2, precision="highest") + b2

    q = (proj(Wq, bq) * jnp.float32(inv_sqrt_d)).astype(compute_dtype)   # 1/sqrt(D) folded into Q
    k_all = proj(Wk, bk).astype(compute_dtype)
    v_all = proj(Wv, bv).astype(compute_dtype)

    # dst-major adjacency mask as int8 (cast before the transpose: 1-byte relayout).
    # TODO(synk): accept a pre-transposed int8 (or bit-packed) adjacency from the caller to avoid
    # this O(N^2) layout pass on very large graphs.
    adjT = adj.astype(jnp.int8).T

    # ---- tiling: single tile for tiny graphs, flash-style dst x src tiles otherwise ----
    if N <= 256:
        tile_dst = tile_src = N            # full-extent blocks (exempt from the (8,128) rule)
    else:
        tile_dst = 256                     # >= 2 "parallel" dst tiles for N > 256 (v7x megacore)
        tile_src = 1024 if N >= 1024 else 512

    nd_pad = ((N + tile_dst - 1) // tile_dst) * tile_dst
    ns_pad = ((N + tile_src - 1) // tile_src) * tile_src
    if nd_pad != N:
        q = jnp.pad(q, ((0, nd_pad - N), (0, 0)))
    if ns_pad != N:
        k_all = jnp.pad(k_all, ((0, ns_pad - N), (0, 0)))
        v_all = jnp.pad(v_all, ((0, ns_pad - N), (0, 0)))
    if nd_pad != N or ns_pad != N:
        adjT = jnp.pad(adjT, ((0, nd_pad - N), (0, ns_pad - N)))

    n_dst = nd_pad // tile_dst
    n_src = ns_pad // tile_src

    # ---- explicit VMEM budget (v5e default scoped limit is 16 MiB; v7x physical is 64 MiB) ----
    bpe = jnp.dtype(compute_dtype).itemsize
    est = (2 * tile_dst * HD * bpe              # q block (double-buffered)
           + 4 * tile_src * HD * bpe            # k + v blocks
           + 2 * tile_dst * tile_src            # int8 adjacency block
           + 2 * tile_dst * HD * 4              # output block
           + tile_dst * (H + HD) * 4            # z / wV accumulators
           + 3 * H * tile_dst * tile_src * 4)   # per-head [td, ts] f32 score temporaries
    vmem_limit = int(min(max(2 * est, 32 * 1024 * 1024), 60 * 1024 * 1024))

    kernel = functools.partial(_mha_kernel, num_heads=H, head_dim=D,
                               possible_empty=possible_empty, score_dtype=score_dtype)

    out_flat = pl.pallas_call(
        kernel,
        out_shape=jax.ShapeDtypeStruct((nd_pad, HD), jnp.float32),
        grid_spec=pltpu.PrefetchScalarGridSpec(
            num_scalar_prefetch=0,
            grid=(n_dst, n_src),
            in_specs=[
                pl.BlockSpec((tile_dst, HD), lambda i, ks: (i, 0)),         # Q (dst tile; copy elided over ks)
                pl.BlockSpec((tile_src, HD), lambda i, ks: (ks, 0)),        # K (src tile)
                pl.BlockSpec((tile_src, HD), lambda i, ks: (ks, 0)),        # V (src tile)
                pl.BlockSpec((tile_dst, tile_src), lambda i, ks: (i, ks)),  # adj^T tile (int8)
            ],
            out_specs=pl.BlockSpec((tile_dst, HD), lambda i, ks: (i, 0)),   # lane-dense output
            scratch_shapes=[
                pltpu.VMEM((tile_dst, H), jnp.float32),    # z accumulator
                pltpu.VMEM((tile_dst, HD), jnp.float32),   # wV accumulator
            ],
        ),
        compiler_params=pltpu.CompilerParams(
            dimension_semantics=("parallel", "arbitrary"),
            vmem_limit_bytes=vmem_limit),
    )(q, k_all, v_all, adjT)

    # [N, H*D] -> [N, H, D] is a free reshape (head-major columns), not a transpose.
    return out_flat[:N].reshape(N, H, D)


def ref_forward(h, adj, Wq, bq, Wk, bk, Wv, bv, possible_empty=True):
    D = Wq.shape[-1]
    sqrt_d = jnp.sqrt(jnp.float32(D))
    Q = jnp.einsum("ni,hid->hnd", h, Wq, precision="highest") + bq
    K = jnp.einsum("ni,hid->hnd", h, Wk, precision="highest") + bk
    V = jnp.einsum("ni,hid->hnd", h, Wv, precision="highest") + bv
    s = jnp.einsum("hnd,hmd->hnm", K, Q, precision="highest") / sqrt_d    # n = src, m = dst
    score = jnp.exp(jnp.clip(s, -5.0, 5.0)) * adj[None]
    z = jnp.sum(score, axis=1)                                            # [H, N_dst]
    wV = jnp.einsum("hnm,hnd->hmd", score, V, precision="highest")        # [H, N_dst, D]
    zt = z[..., None]
    if possible_empty:
        out = jnp.where(zt > 0.0, wV / jnp.where(zt > 0.0, zt, 1.0), wV)
    else:
        out = wV / zt
    return jnp.transpose(out, (1, 0, 2))


if __name__ == "__main__":
    def make_inputs(key, N, in_dim, D, H, edge_p, empty_col):
        k_h, k_adj, kq, kbq, kk_, kbk, kv_, kbv = jax.random.split(key, 8)
        h = jax.random.normal(k_h, (N, in_dim), dtype=jnp.float32)
        adj = (jax.random.uniform(k_adj, (N, N)) < edge_p).astype(jnp.float32)
        adj = adj * (1.0 - jnp.eye(N, dtype=jnp.float32))   # no self loops
        adj = adj.at[:, empty_col].set(0.0)                 # one destination with no in-edges
        scale = 0.1
        Wq = scale * jax.random.normal(kq, (H, in_dim, D), dtype=jnp.float32)
        bq = scale * jax.random.normal(kbq, (H, 1, D), dtype=jnp.float32)
        Wk = scale * jax.random.normal(kk_, (H, in_dim, D), dtype=jnp.float32)
        bk = scale * jax.random.normal(kbk, (H, 1, D), dtype=jnp.float32)
        Wv = scale * jax.random.normal(kv_, (H, in_dim, D), dtype=jnp.float32)
        bv = scale * jax.random.normal(kbv, (H, 1, D), dtype=jnp.float32)
        return h, adj, Wq, bq, Wk, bk, Wv, bv

    key = jax.random.PRNGKey(0)
    k_small, k_big = jax.random.split(key)

    # --- small graph, exact f32 path (matches torch f32 numerics) ---
    args = make_inputs(k_small, N=16, in_dim=8, D=8, H=4, edge_p=0.3, empty_col=0)
    ref = ref_forward(*args, possible_empty=True)

    out_f32 = mha_forward(*args, possible_empty=True,
                          compute_dtype=jnp.float32, score_dtype=jnp.float32)
    out_f32 = jax.block_until_ready(out_f32)
    assert out_f32.shape == (16, 4, 8)
    assert jnp.allclose(out_f32, ref, atol=1e-4, rtol=1e-4), "f32 path mismatch vs. reference"

    # --- small graph, default perf path (bf16 MXU operands, f32 accumulation) ---
    out_bf16 = jax.block_until_ready(mha_forward(*args, possible_empty=True))
    assert jnp.allclose(out_bf16, ref, atol=3e-2, rtol=3e-2), "bf16 path mismatch vs. reference"

    # --- larger graph: exercises padding + multi-tile flash path (dst-parallel, src-reduction) ---
    args2 = make_inputs(k_big, N=600, in_dim=32, D=16, H=4, edge_p=0.02, empty_col=7)
    ref2 = ref_forward(*args2, possible_empty=True)
    out2 = jax.block_until_ready(mha_forward(*args2, possible_empty=True))
    assert out2.shape == (600, 4, 16)
    assert jnp.allclose(out2, ref2, atol=5e-2, rtol=5e-2), "tiled path mismatch vs. reference"

    print("KERNEL_OK")
</pallas_src>

<mosaic_0001>
module attributes {stable_mosaic.version = 11 : i64} {
  func.func @_mha_kernel(%arg0: i32, %arg1: i32, %arg2: memref<16x32xf32, #tpu.memory_space<vmem>>, %arg3: memref<16x32xf32, #tpu.memory_space<vmem>>, %arg4: memref<16x32xf32, #tpu.memory_space<vmem>>, %arg5: memref<16x16xi8, #tpu.memory_space<vmem>>, %arg6: memref<16x32xf32, #tpu.memory_space<vmem>>, %arg7: memref<16x4xf32, #tpu.memory_space<vmem>>, %arg8: memref<16x32xf32, #tpu.memory_space<vmem>>) attributes {dimension_semantics = [#tpu.dimension_semantics<parallel>, #tpu.dimension_semantics<arbitrary>], iteration_bounds = array<i64: 1, 1>, scalar_prefetch = 0 : i64, scratch_operands = 2 : i64, tpu.core_type = #tpu.core_type<tc>, window_params = [{transform_indices = @transform_0, window_bounds = array<i64: 16, 32>}, {transform_indices = @transform_1, window_bounds = array<i64: 16, 32>}, {transform_indices = @transform_2, window_bounds = array<i64: 16, 32>}, {transform_indices = @transform_3, window_bounds = array<i64: 16, 16>}, {transform_indices = @transform_4, window_bounds = array<i64: 16, 32>}]} {
    %c0_i32 = arith.constant 0 : i32
    %0 = arith.cmpi eq, %arg1, %c0_i32 : i32
    %1 = arith.extui %0 : i1 to i32
    %c0_i32_0 = arith.constant 0 : i32
    %2 = arith.cmpi ne, %1, %c0_i32_0 : i32
    scf.if %2 {
      %cst_55 = arith.constant 0.000000e+00 : f32
      %87 = vector.broadcast %cst_55 : f32 to vector<16x4xf32>
      %c0_56 = arith.constant 0 : index
      %c0_57 = arith.constant 0 : index
      %88 = vector.load %arg7[%c0_56, %c0_57] : memref<16x4xf32, #tpu.memory_space<vmem>>, vector<16x4xf32>
      tpu.vector_store %arg7[%c0_56, %c0_57], %87 {strides = array<i32>} : memref<16x4xf32, #tpu.memory_space<vmem>>, vector<16x4xf32>,
      %cst_58 = arith.constant 0.000000e+00 : f32
      %89 = vector.broadcast %cst_58 : f32 to vector<16x32xf32>
      %c0_59 = arith.constant 0 : index
      %c0_60 = arith.constant 0 : index
      %90 = vector.load %arg8[%c0_59, %c0_60] : memref<16x32xf32, #tpu.memory_space<vmem>>, vector<16x32xf32>
      tpu.vector_store %arg8[%c0_59, %c0_60], %89 {strides = array<i32>} : memref<16x32xf32, #tpu.memory_space<vmem>>, vector<16x32xf32>,
    } else {
    }
    %c0 = arith.constant 0 : index
    %c0_1 = arith.constant 0 : index
    %3 = vector.load %arg5[%c0, %c0_1] : memref<16x16xi8, #tpu.memory_space<vmem>>, vector<16x16xi8>
    %4 = arith.sitofp %3 : vector<16x16xi8> to vector<16x16xf32>
    %c0_2 = arith.constant 0 : index
    %c0_3 = arith.constant 0 : index
    %5 = vector.load %arg2[%c0_2, %c0_3] : memref<16x32xf32, #tpu.memory_space<vmem>>, vector<16x32xf32>
    %c0_4 = arith.constant 0 : index
    %c0_5 = arith.constant 0 : index
    %6 = vector.load %arg3[%c0_4, %c0_5] : memref<16x32xf32, #tpu.memory_space<vmem>>, vector<16x32xf32>
    %c0_6 = arith.constant 0 : index
    %c0_7 = arith.constant 0 : index
    %7 = vector.load %arg4[%c0_6, %c0_7] : memref<16x32xf32, #tpu.memory_space<vmem>>, vector<16x32xf32>
    %8 = vector.extract_strided_slice %5 {offsets = [0, 0], sizes = [16, 8], strides = [1, 1]} : vector<16x32xf32> to vector<16x8xf32>
    %9 = vector.extract_strided_slice %6 {offsets = [0, 0], sizes = [16, 8], strides = [1, 1]} : vector<16x32xf32> to vector<16x8xf32>
    %10 = vector.extract_strided_slice %7 {offsets = [0, 0], sizes = [16, 8], strides = [1, 1]} : vector<16x32xf32> to vector<16x8xf32>
    %cst = arith.constant dense<0.000000e+00> : vector<16x16xf32>
    %11 = tpu.matmul %8, %9, %cst {dimension_numbers = #tpu.dot_dimension_numbers<[1], [1], [0], [0], [0, 0, 1, 0], [], []>} : vector<16x8xf32>, vector<16x8xf32>, vector<16x16xf32> -> vector<16x16xf32>
    %cst_8 = arith.constant -5.000000e+00 : f32
    %cst_9 = arith.constant 5.000000e+00 : f32
    %12 = vector.broadcast %cst_8 : f32 to vector<16x16xf32>
    %13 = arith.maximumf %12, %11 : vector<16x16xf32>
    %14 = vector.broadcast %cst_9 : f32 to vector<16x16xf32>
    %15 = arith.minimumf %14, %13 : vector<16x16xf32>
    %16 = math.exp %15 : vector<16x16xf32>
    %17 = arith.mulf %16, %4 : vector<16x16xf32>
    %c0_10 = arith.constant 0 : index
    %c0_11 = arith.constant 0 : index
    %18 = vector.load %arg7[%c0_10, %c0_11] : memref<16x4xf32, #tpu.memory_space<vmem>>, vector<16x1xf32>
    %cst_12 = arith.constant dense<0.000000e+00> : vector<16xf32>
    %19 = vector.multi_reduction <add>, %17, %cst_12 [1] : vector<16x16xf32> to vector<16xf32>
    %20 = vector.shape_cast %19 : vector<16xf32> to vector<16x1xf32>
    %21 = arith.addf %18, %20 : vector<16x1xf32>
    %c0_13 = arith.constant 0 : index
    %c0_14 = arith.constant 0 : index
    %22 = vector.load %arg7[%c0_13, %c0_14] : memref<16x4xf32, #tpu.memory_space<vmem>>, vector<16x1xf32>
    tpu.vector_store %arg7[%c0_13, %c0_14], %21 {strides = array<i32>} : memref<16x4xf32, #tpu.memory_space<vmem>>, vector<16x1xf32>,
    %c0_15 = arith.constant 0 : index
    %c0_16 = arith.constant 0 : index
    %23 = vector.load %arg8[%c0_15, %c0_16] : memref<16x32xf32, #tpu.memory_space<vmem>>, vector<16x8xf32>
    %cst_17 = arith.constant dense<0.000000e+00> : vector<16x8xf32>
    %24 = tpu.matmul %17, %10, %cst_17 {dimension_numbers = #tpu.dot_dimension_numbers<[1], [0], [0], [1], [0, 0, 1, 1], [], []>} : vector<16x16xf32>, vector<16x8xf32>, vector<16x8xf32> -> vector<16x8xf32>
    %25 = arith.addf %23, %24 : vector<16x8xf32>
    %c0_18 = arith.constant 0 : index
    %c0_19 = arith.constant 0 : index
    %26 = vector.load %arg8[%c0_18, %c0_19] : memref<16x32xf32, #tpu.memory_space<vmem>>, vector<16x8xf32>
    tpu.vector_store %arg8[%c0_18, %c0_19], %25 {strides = array<i32>} : memref<16x32xf32, #tpu.memory_space<vmem>>, vector<16x8xf32>,
    %27 = vector.extract_strided_slice %5 {offsets = [0, 8], sizes = [16, 8], strides = [1, 1]} : vector<16x32xf32> to vector<16x8xf32>
    %28 = vector.extract_strided_slice %6 {offsets = [0, 8], sizes = [16, 8], strides = [1, 1]} : vector<16x32xf32> to vector<16x8xf32>
    %29 = vector.extract_strided_slice %7 {offsets = [0, 8], sizes = [16, 8], strides = [1, 1]} : vector<16x32xf32> to vector<16x8xf32>
    %cst_20 = arith.constant dense<0.000000e+00> : vector<16x16xf32>
    %30 = tpu.matmul %27, %28, %cst_20 {dimension_numbers = #tpu.dot_dimension_numbers<[1], [1], [0], [0], [0, 0, 1, 0], [], []>} : vector<16x8xf32>, vector<16x8xf32>, vector<16x16xf32> -> vector<16x16xf32>
    %cst_21 = arith.constant -5.000000e+00 : f32
    %cst_22 = arith.constant 5.000000e+00 : f32
    %31 = vector.broadcast %cst_21 : f32 to vector<16x16xf32>
    %32 = arith.maximumf %31, %30 : vector<16x16xf32>
    %33 = vector.broadcast %cst_22 : f32 to vector<16x16xf32>
    %34 = arith.minimumf %33, %32 : vector<16x16xf32>
    %35 = math.exp %34 : vector<16x16xf32>
    %36 = arith.mulf %35, %4 : vector<16x16xf32>
    %c0_23 = arith.constant 0 : index
    %c1 = arith.constant 1 : index
    %37 = vector.load %arg7[%c0_23, %c1] : memref<16x4xf32, #tpu.memory_space<vmem>>, vector<16x1xf32>
    %cst_24 = arith.constant dense<0.000000e+00> : vector<16xf32>
    %38 = vector.multi_reduction <add>, %36, %cst_24 [1] : vector<16x16xf32> to vector<16xf32>
    %39 = vector.shape_cast %38 : vector<16xf32> to vector<16x1xf32>
    %40 = arith.addf %37, %39 : vector<16x1xf32>
    %c0_25 = arith.constant 0 : index
    %c1_26 = arith.constant 1 : index
    %41 = vector.load %arg7[%c0_25, %c1_26] : memref<16x4xf32, #tpu.memory_space<vmem>>, vector<16x1xf32>
    tpu.vector_store %arg7[%c0_25, %c1_26], %40 {strides = array<i32>} : memref<16x4xf32, #tpu.memory_space<vmem>>, vector<16x1xf32>,
    %c0_27 = arith.constant 0 : index
    %c8 = arith.constant 8 : index
    %42 = vector.load %arg8[%c0_27, %c8] : memref<16x32xf32, #tpu.memory_space<vmem>>, vector<16x8xf32>
    %cst_28 = arith.constant dense<0.000000e+00> : vector<16x8xf32>
    %43 = tpu.matmul %36, %29, %cst_28 {dimension_numbers = #tpu.dot_dimension_numbers<[1], [0], [0], [1], [0, 0, 1, 1], [], []>} : vector<16x16xf32>, vector<16x8xf32>, vector<16x8xf32> -> vector<16x8xf32>
    %44 = arith.addf %42, %43 : vector<16x8xf32>
    %c0_29 = arith.constant 0 : index
    %c8_30 = arith.constant 8 : index
    %45 = vector.load %arg8[%c0_29, %c8_30] : memref<16x32xf32, #tpu.memory_space<vmem>>, vector<16x8xf32>
    tpu.vector_store %arg8[%c0_29, %c8_30], %44 {strides = array<i32>} : memref<16x32xf32, #tpu.memory_space<vmem>>, vector<16x8xf32>,
    %46 = vector.extract_strided_slice %5 {offsets = [0, 16], sizes = [16, 8], strides = [1, 1]} : vector<16x32xf32> to vector<16x8xf32>
    %47 = vector.extract_strided_slice %6 {offsets = [0, 16], sizes = [16, 8], strides = [1, 1]} : vector<16x32xf32> to vector<16x8xf32>
    %48 = vector.extract_strided_slice %7 {offsets = [0, 16], sizes = [16, 8], strides = [1, 1]} : vector<16x32xf32> to vector<16x8xf32>
    %cst_31 = arith.constant dense<0.000000e+00> : vector<16x16xf32>
    %49 = tpu.matmul %46, %47, %cst_31 {dimension_numbers = #tpu.dot_dimension_numbers<[1], [1], [0], [0], [0, 0, 1, 0], [], []>} : vector<16x8xf32>, vector<16x8xf32>, vector<16x16xf32> -> vector<16x16xf32>
    %cst_32 = arith.constant -5.000000e+00 : f32
    %cst_33 = arith.constant 5.000000e+00 : f32
    %50 = vector.broadcast %cst_32 : f32 to vector<16x16xf32>
    %51 = arith.maximumf %50, %49 : vector<16x16xf32>
    %52 = vector.broadcast %cst_33 : f32 to vector<16x16xf32>
    %53 = arith.minimumf %52, %51 : vector<16x16xf32>
    %54 = math.exp %53 : vector<16x16xf32>
    %55 = arith.mulf %54, %4 : vector<16x16xf32>
    %c0_34 = arith.constant 0 : index
    %c2 = arith.constant 2 : index
    %56 = vector.load %arg7[%c0_34, %c2] : memref<16x4xf32, #tpu.memory_space<vmem>>, vector<16x1xf32>
    %cst_35 = arith.constant dense<0.000000e+00> : vector<16xf32>
    %57 = vector.multi_reduction <add>, %55, %cst_35 [1] : vector<16x16xf32> to vector<16xf32>
    %58 = vector.shape_cast %57 : vector<16xf32> to vector<16x1xf32>
    %59 = arith.addf %56, %58 : vector<16x1xf32>
    %c0_36 = arith.constant 0 : index
    %c2_37 = arith.constant 2 : index
    %60 = vector.load %arg7[%c0_36, %c2_37] : memref<16x4xf32, #tpu.memory_space<vmem>>, vector<16x1xf32>
    tpu.vector_store %arg7[%c0_36, %c2_37], %59 {strides = array<i32>} : memref<16x4xf32, #tpu.memory_space<vmem>>, vector<16x1xf32>,
    %c0_38 = arith.constant 0 : index
    %c16 = arith.constant 16 : index
    %61 = vector.load %arg8[%c0_38, %c16] : memref<16x32xf32, #tpu.memory_space<vmem>>, vector<16x8xf32>
    %cst_39 = arith.constant dense<0.000000e+00> : vector<16x8xf32>
    %62 = tpu.matmul %55, %48, %cst_39 {dimension_numbers = #tpu.dot_dimension_numbers<[1], [0], [0], [1], [0, 0, 1, 1], [], []>} : vector<16x16xf32>, vector<16x8xf32>, vector<16x8xf32> -> vector<16x8xf32>
    %63 = arith.addf %61, %62 : vector<16x8xf32>
    %c0_40 = arith.constant 0 : index
    %c16_41 = arith.constant 16 : index
    %64 = vector.load %arg8[%c0_40, %c16_41] : memref<16x32xf32, #tpu.memory_space<vmem>>, vector<16x8xf32>
    tpu.vector_store %arg8[%c0_40, %c16_41], %63 {strides = array<i32>} : memref<16x32xf32, #tpu.memory_space<vmem>>, vector<16x8xf32>,
    %65 = vector.extract_strided_slice %5 {offsets = [0, 24], sizes = [16, 8], strides = [1, 1]} : vector<16x32xf32> to vector<16x8xf32>
    %66 = vector.extract_strided_slice %6 {offsets = [0, 24], sizes = [16, 8], strides = [1, 1]} : vector<16x32xf32> to vector<16x8xf32>
    %67 = vector.extract_strided_slice %7 {offsets = [0, 24], sizes = [16, 8], strides = [1, 1]} : vector<16x32xf32> to vector<16x8xf32>
    %cst_42 = arith.constant dense<0.000000e+00> : vector<16x16xf32>
    %68 = tpu.matmul %65, %66, %cst_42 {dimension_numbers = #tpu.dot_dimension_numbers<[1], [1], [0], [0], [0, 0, 1, 0], [], []>} : vector<16x8xf32>, vector<16x8xf32>, vector<16x16xf32> -> vector<16x16xf32>
    %cst_43 = arith.constant -5.000000e+00 : f32
    %cst_44 = arith.constant 5.000000e+00 : f32
    %69 = vector.broadcast %cst_43 : f32 to vector<16x16xf32>
    %70 = arith.maximumf %69, %68 : vector<16x16xf32>
    %71 = vector.broadcast %cst_44 : f32 to vector<16x16xf32>
    %72 = arith.minimumf %71, %70 : vector<16x16xf32>
    %73 = math.exp %72 : vector<16x16xf32>
    %74 = arith.mulf %73, %4 : vector<16x16xf32>
    %c0_45 = arith.constant 0 : index
    %c3 = arith.constant 3 : index
    %75 = vector.load %arg7[%c0_45, %c3] : memref<16x4xf32, #tpu.memory_space<vmem>>, vector<16x1xf32>
    %cst_46 = arith.constant dense<0.000000e+00> : vector<16xf32>
    %76 = vector.multi_reduction <add>, %74, %cst_46 [1] : vector<16x16xf32> to vector<16xf32>
    %77 = vector.shape_cast %76 : vector<16xf32> to vector<16x1xf32>
    %78 = arith.addf %75, %77 : vector<16x1xf32>
    %c0_47 = arith.constant 0 : index
    %c3_48 = arith.constant 3 : index
    %79 = vector.load %arg7[%c0_47, %c3_48] : memref<16x4xf32, #tpu.memory_space<vmem>>, vector<16x1xf32>
    tpu.vector_store %arg7[%c0_47, %c3_48], %78 {strides = array<i32>} : memref<16x4xf32, #tpu.memory_space<vmem>>, vector<16x1xf32>,
    %c0_49 = arith.constant 0 : index
    %c24 = arith.constant 24 : index
    %80 = vector.load %arg8[%c0_49, %c24] : memref<16x32xf32, #tpu.memory_space<vmem>>, vector<16x8xf32>
    %cst_50 = arith.constant dense<0.000000e+00> : vector<16x8xf32>
    %81 = tpu.matmul %74, %67, %cst_50 {dimension_numbers = #tpu.dot_dimension_numbers<[1], [0], [0], [1], [0, 0, 1, 1], [], []>} : vector<16x16xf32>, vector<16x8xf32>, vector<16x8xf32> -> vector<16x8xf32>
    %82 = arith.addf %80, %81 : vector<16x8xf32>
    %c0_51 = arith.constant 0 : index
    %c24_52 = arith.constant 24 : index
    %83 = vector.load %arg8[%c0_51, %c24_52] : memref<16x32xf32, #tpu.memory_space<vmem>>, vector<16x8xf32>
    tpu.vector_store %arg8[%c0_51, %c24_52], %82 {strides = array<i32>} : memref<16x32xf32, #tpu.memory_space<vmem>>, vector<16x8xf32>,
    %c0_i32_53 = arith.constant 0 : i32
    %84 = arith.cmpi eq, %arg1, %c0_i32_53 : i32
    %85 = arith.extui %84 : i1 to i32
    %c0_i32_54 = arith.constant 0 : i32
    %86 = arith.cmpi ne, %85, %c0_i32_54 : i32
    scf.if %86 {
      %c0_55 = arith.constant 0 : index
      %c0_56 = arith.constant 0 : index
      %87 = vector.load %arg7[%c0_55, %c0_56] : memref<16x4xf32, #tpu.memory_space<vmem>>, vector<16x1xf32>
      %cst_57 = arith.constant 0.000000e+00 : f32
      %88 = vector.broadcast %cst_57 : f32 to vector<16x1xf32>
      %89 = arith.cmpf ogt, %87, %88 : vector<16x1xf32>
      %cst_58 = arith.constant 1.000000e+00 : f32
      %90 = vector.broadcast %cst_58 : f32 to vector<16x1xf32>
      %91 = arith.select %89, %87, %90 : vector<16x1xi1>, vector<16x1xf32>
      %c0_59 = arith.constant 0 : index
      %c0_60 = arith.constant 0 : index
      %92 = vector.load %arg8[%c0_59, %c0_60] : memref<16x32xf32, #tpu.memory_space<vmem>>, vector<16x8xf32>
      %93 = vector.broadcast %91 : vector<16x1xf32> to vector<16x8xf32>
      %94 = arith.divf %92, %93 : vector<16x8xf32>
      %c0_61 = arith.constant 0 : index
      %c0_62 = arith.constant 0 : index
      %95 = vector.load %arg6[%c0_61, %c0_62] : memref<16x32xf32, #tpu.memory_space<vmem>>, vector<16x8xf32>
      tpu.vector_store %arg6[%c0_61, %c0_62], %94 {strides = array<i32>} : memref<16x32xf32, #tpu.memory_space<vmem>>, vector<16x8xf32>,
      %c0_63 = arith.constant 0 : index
      %c1_64 = arith.constant 1 : index
      %96 = vector.load %arg7[%c0_63, %c1_64] : memref<16x4xf32, #tpu.memory_space<vmem>>, vector<16x1xf32>
      %cst_65 = arith.constant 0.000000e+00 : f32
      %97 = vector.broadcast %cst_65 : f32 to vector<16x1xf32>
      %98 = arith.cmpf ogt, %96, %97 : vector<16x1xf32>
      %cst_66 = arith.constant 1.000000e+00 : f32
      %99 = vector.broadcast %cst_66 : f32 to vector<16x1xf32>
      %100 = arith.select %98, %96, %99 : vector<16x1xi1>, vector<16x1xf32>
      %c0_67 = arith.constant 0 : index
      %c8_68 = arith.constant 8 : index
      %101 = vector.load %arg8[%c0_67, %c8_68] : memref<16x32xf32, #tpu.memory_space<vmem>>, vector<16x8xf32>
      %102 = vector.broadcast %100 : vector<16x1xf32> to vector<16x8xf32>
      %103 = arith.divf %101, %102 : vector<16x8xf32>
      %c0_69 = arith.constant 0 : index
      %c8_70 = arith.constant 8 : index
      %104 = vector.load %arg6[%c0_69, %c8_70] : memref<16x32xf32, #tpu.memory_space<vmem>>, vector<16x8xf32>
      tpu.vector_store %arg6[%c0_69, %c8_70], %103 {strides = array<i32>} : memref<16x32xf32, #tpu.memory_space<vmem>>, vector<16x8xf32>,
      %c0_71 = arith.constant 0 : index
      %c2_72 = arith.constant 2 : index
      %105 = vector.load %arg7[%c0_71, %c2_72] : memref<16x4xf32, #tpu.memory_space<vmem>>, vector<16x1xf32>
      %cst_73 = arith.constant 0.000000e+00 : f32
      %106 = vector.broadcast %cst_73 : f32 to vector<16x1xf32>
      %107 = arith.cmpf ogt, %105, %106 : vector<16x1xf32>
      %cst_74 = arith.constant 1.000000e+00 : f32
      %108 = vector.broadcast %cst_74 : f32 to vector<16x1xf32>
      %109 = arith.select %107, %105, %108 : vector<16x1xi1>, vector<16x1xf32>
      %c0_75 = arith.constant 0 : index
      %c16_76 = arith.constant 16 : index
      %110 = vector.load %arg8[%c0_75, %c16_76] : memref<16x32xf32, #tpu.memory_space<vmem>>, vector<16x8xf32>
      %111 = vector.broadcast %109 : vector<16x1xf32> to vector<16x8xf32>
      %112 = arith.divf %110, %111 : vector<16x8xf32>
      %c0_77 = arith.constant 0 : index
      %c16_78 = arith.constant 16 : index
      %113 = vector.load %arg6[%c0_77, %c16_78] : memref<16x32xf32, #tpu.memory_space<vmem>>, vector<16x8xf32>
      tpu.vector_store %arg6[%c0_77, %c16_78], %112 {strides = array<i32>} : memref<16x32xf32, #tpu.memory_space<vmem>>, vector<16x8xf32>,
      %c0_79 = arith.constant 0 : index
      %c3_80 = arith.constant 3 : index
      %114 = vector.load %arg7[%c0_79, %c3_80] : memref<16x4xf32, #tpu.memory_space<vmem>>, vector<16x1xf32>
      %cst_81 = arith.constant 0.000000e+00 : f32
      %115 = vector.broadcast %cst_81 : f32 to vector<16x1xf32>
      %116 = arith.cmpf ogt, %114, %115 : vector<16x1xf32>
      %cst_82 = arith.constant 1.000000e+00 : f32
      %117 = vector.broadcast %cst_82 : f32 to vector<16x1xf32>
      %118 = arith.select %116, %114, %117 : vector<16x1xi1>, vector<16x1xf32>
      %c0_83 = arith.constant 0 : index
      %c24_84 = arith.constant 24 : index
      %119 = vector.load %arg8[%c0_83, %c24_84] : memref<16x32xf32, #tpu.memory_space<vmem>>, vector<16x8xf32>
      %120 = vector.broadcast %118 : vector<16x1xf32> to vector<16x8xf32>
      %121 = arith.divf %119, %120 : vector<16x8xf32>
      %c0_85 = arith.constant 0 : index
      %c24_86 = arith.constant 24 : index
      %122 = vector.load %arg6[%c0_85, %c24_86] : memref<16x32xf32, #tpu.memory_space<vmem>>, vector<16x8xf32>
      tpu.vector_store %arg6[%c0_85, %c24_86], %121 {strides = array<i32>} : memref<16x32xf32, #tpu.memory_space<vmem>>, vector<16x8xf32>,
    } else {
    }
    return
  }
  func.func @transform_0(%arg0: i32, %arg1: i32) -> (i32, i32) {
    %c0_i32 = arith.constant 0 : i32
    %c0_i32_0 = arith.constant 0 : i32
    return %arg0, %c0_i32 : i32, i32
  }
  func.func @transform_1(%arg0: i32, %arg1: i32) -> (i32, i32) {
    %c0_i32 = arith.constant 0 : i32
    %c0_i32_0 = arith.constant 0 : i32
    return %arg1, %c0_i32 : i32, i32
  }
  func.func @transform_2(%arg0: i32, %arg1: i32) -> (i32, i32) {
    %c0_i32 = arith.constant 0 : i32
    %c0_i32_0 = arith.constant 0 : i32
    return %arg1, %c0_i32 : i32, i32
  }
  func.func @transform_3(%arg0: i32, %arg1: i32) -> (i32, i32) {
    %c0_i32 = arith.constant 0 : i32
    return %arg0, %arg1 : i32, i32
  }
  func.func @transform_4(%arg0: i32, %arg1: i32) -> (i32, i32) {
    %c0_i32 = arith.constant 0 : i32
    %c0_i32_0 = arith.constant 0 : i32
    return %arg0, %c0_i32 : i32, i32
  }
}

</mosaic_0001>

<llo_original>
// kernel: tpu_custom_call.1
$region0: #{tpu_custom_call.1}
  #allocation0 [shape = 'u32[]', space=smem, size = 0x4, offset = 0x4, fixed_abs, tag = 'smem constant byte address 0x4 - core index']
  #allocation1 [shape = 'u32[144,128]{1,0:T(1,128)}', space=vmem, size = 0x12000, scoped, tag = 'internal scratch']
  #allocation2 [shape = 'f32[16,4]{1,0:T(8,128)}', space=vmem, size = 0x2000, scoped, tag = 'scratch operand']
  #allocation3 [shape = 'f32[16,32]{1,0:T(8,128)}', space=vmem, size = 0x2000, scoped, tag = 'scratch operand']
  %s0 = inlined_call_operand.hbm [shape: f32[16,32], index: 0, kind: input, shape index: {}]
  %s1 = inlined_call_operand.hbm [shape: f32[16,32], index: 1, kind: input, shape index: {}]
  %s2 = inlined_call_operand.hbm [shape: f32[16,32], index: 2, kind: input, shape index: {}]
  %s3 = inlined_call_operand.vmem [shape: s8[16,16], index: 3, kind: input, shape index: {}]
  %s4 = inlined_call_operand.hbm [shape: f32[16,32], index: 4, kind: output, shape index: {}]
  %s5 = sld [smem:[#allocation0]]
  $region46: #{tpu_custom_call.1} parent=0
    _
  %s7 = ssub.s32 1, %s5
  %s8 = scalar_select 0, %s7, %s5
  $region1: #{tpu_custom_call.1} parent=0
    #allocation4 [shape = 'u8[8192]{0}', space=vmem, size = 0x2000, scoped, tag = 'input window, operand 0, single buffered']
    #allocation5 [shape = 's32[1]{0}', space=sflag, size = 0x4, scoped, tag = 'scoped memory for tpu_custom_call.1']
    #allocation6 [shape = 's32[1]{0}', space=sflag, size = 0x4, scoped, tag = 'scoped memory for tpu_custom_call.1']
    #allocation7 [shape = 'u8[8192]{0}', space=vmem, size = 0x2000, scoped, tag = 'input window, operand 1, single buffered']
    #allocation8 [shape = 's32[1]{0}', space=sflag, size = 0x4, scoped, tag = 'scoped memory for tpu_custom_call.1']
    #allocation9 [shape = 'u8[8192]{0}', space=vmem, size = 0x2000, scoped, tag = 'input window, operand 2, single buffered']
    #allocation10 [shape = 'u8[8192]{0}', space=vmem, size = 0x2000, scoped, tag = 'output window, operand 0, single buffered']
    %9 = vsyncpa [#allocation5], 0
    %10 = vsyncpa [#allocation8], 0
    %11 = vsyncpa [#allocation6], 0
    // Predicated region
    $region2: #{tpu_custom_call.1} parent=1 // pred_check
      _
    $region3: #{tpu_custom_call.1} parent=1 // pred_check_branch
      %13 = sbr.rel (0) target = $region5
    $region4: #{tpu_custom_call.1} parent=1 // pred_region
      %s15 = ssub.s32 256, 256
      %16 = vsyncadd [#allocation5], %s15
      %s17 = sshll.u32 [#allocation4], 4
      %s18 = int_to_ptr.vmem [resolvable:$true] %s17
      %23 = dma.hbm_to_vmem [thread:$0]  %s0, 256, %s18, [#allocation5], 128, 128, 8
    $region5: #{tpu_custom_call.1} parent=1 // pred_fallthru
      _
    // Predicated region
    $region6: #{tpu_custom_call.1} parent=1 // pred_check
      _
    $region7: #{tpu_custom_call.1} parent=1 // pred_check_branch
      %25 = sbr.rel (0) target = $region9
    $region8: #{tpu_custom_call.1} parent=1 // pred_region
      %s27 = ssub.s32 256, 256
      %28 = vsyncadd [#allocation8], %s27
      %s29 = sshll.u32 [#allocation7], 4
      %s30 = int_to_ptr.vmem [resolvable:$true] %s29
      %35 = dma.hbm_to_vmem [thread:$0]  %s1, 256, %s30, [#allocation8], 128, 128, 8
    $region9: #{tpu_custom_call.1} parent=1 // pred_fallthru
      _
    // Predicated region
    $region10: #{tpu_custom_call.1} parent=1 // pred_check
      _
    $region11: #{tpu_custom_call.1} parent=1 // pred_check_branch
      %37 = sbr.rel (0) target = $region13
    $region12: #{tpu_custom_call.1} parent=1 // pred_region
      %s39 = ssub.s32 256, 256
      %40 = vsyncadd [#allocation8], %s39
      %s41 = sshll.u32 [#allocation9], 4
      %s42 = int_to_ptr.vmem [resolvable:$true] %s41
      %47 = dma.hbm_to_vmem [thread:$0]  %s2, 256, %s42, [#allocation8], 128, 128, 8
    $region13: #{tpu_custom_call.1} parent=1 // pred_fallthru
      _
    // Predicated region
    $region14: #{tpu_custom_call.1} parent=1 // pred_check
      _
    $region15: #{tpu_custom_call.1} parent=1 // pred_check_branch
      %49 = sbr.rel (0) target = $region17
    $region16: #{tpu_custom_call.1} parent=1 // pred_region
      _
    $region17: #{tpu_custom_call.1} parent=1 // pred_fallthru
      _
    // Predicated region
    $region18: #{tpu_custom_call.1} parent=1 // pred_check
      _
    $region19: #{tpu_custom_call.1} parent=1 // pred_check_branch
      %51 = sbr.rel (0) target = $region21
    $region20: #{tpu_custom_call.1} parent=1 // pred_region
      %52 = dma.done [#allocation5], 256
    $region21: #{tpu_custom_call.1} parent=1 // pred_fallthru
      _
    // Predicated region
    $region22: #{tpu_custom_call.1} parent=1 // pred_check
      _
    $region23: #{tpu_custom_call.1} parent=1 // pred_check_branch
      %54 = sbr.rel (0) target = $region25
    $region24: #{tpu_custom_call.1} parent=1 // pred_region
      %55 = dma.done [#allocation8], 256
    $region25: #{tpu_custom_call.1} parent=1 // pred_fallthru
      _
    // Predicated region
    $region26: #{tpu_custom_call.1} parent=1 // pred_check
      _
    $region27: #{tpu_custom_call.1} parent=1 // pred_check_branch
      %57 = sbr.rel (0) target = $region29
    $region28: #{tpu_custom_call.1} parent=1 // pred_region
      %58 = dma.done [#allocation8], 256
    $region29: #{tpu_custom_call.1} parent=1 // pred_fallthru
      _
    %p59 = scmp.eq.s32.totalorder 0, 0
    // Predicated region
    $region30: #{tpu_custom_call.1} parent=1 // pred_check
      %p60 = pneg %p59
    $region31: #{tpu_custom_call.1} parent=1 // pred_check_branch
      %62 = sbr.rel (%p60) target = $region33
    $region32: #{tpu_custom_call.1} parent=1 // pred_region
      %vm63 = vcmask 31744
      %64 = vst.msk [vmem:[#allocation2] sm:$0xff] %vm63, 0.0
      %65 = vst.msk [vmem:[#allocation2 + $0x8] sm:$0xff] %vm63, 0.0
      %vm66 = vcmask 261120
      %67 = vst.msk [vmem:[#allocation3] sm:$0xff] %vm66, 0.0
      %68 = vst.msk [vmem:[#allocation3 + $0x8] sm:$0xff] %vm66, 0.0
    $region33: #{tpu_custom_call.1} parent=1 // pred_fallthru
      _
    %v69 = vld [vmem:[%s3] sm:$0x3]
    %v70 = vld [vmem:[%s3 + $0x2] sm:$0x3]
    %v71 = vunpack.c.0.s8 %v69
    %v72 = vunpack.c.0.s8 %v70
    %v73 = vcvt.s32.f32 %v71
    %v74 = vcvt.s32.f32 %v72
    %v75 = vld [vmem:[#allocation4] sm:$0xff]
    %v76 = vld [vmem:[#allocation4 + $0x8] sm:$0xff]
    %v77 = vld [vmem:[#allocation7] sm:$0xff]
    %v78 = vld [vmem:[#allocation7 + $0x8] sm:$0xff]
    %v79 = vld [vmem:[#allocation9] sm:$0xff]
    %v80 = vld [vmem:[#allocation9 + $0x8] sm:$0xff]
    %vm81 = vcmask 64512
    %v83 = vsel %vm81, %v75, 0
    %v86 = vsel %vm81, %v76, 0
    %v89 = vsel %vm81, %v77, 0
    %v92 = vsel %vm81, %v78, 0
    %94 = vmatprep.subr.mxu0 0.0
    %95 = vmatpush1.xpose.msra.mxu0 %v89
    %96 = vmatprep.subr.mxu0 0.0
    %97 = vmatpush1.xpose.msra.mxu0 %v92
    %98 = vmatprep.subr.mxu0 0.0
    %99 = vmatpush1.xpose.msra.mxu0 0.0
    %100 = vmatprep.subr.mxu0 0.0
    %101 = vmatpush1.xpose.msra.mxu0 0.0
    %102 = vmatprep.subr.mxu0 0.0
    %103 = vmatpush1.xpose.msra.mxu0 0.0
    %104 = vmatprep.subr.mxu0 0.0
    %105 = vmatpush1.xpose.msra.mxu0 0.0
    %106 = vmatprep.subr.mxu0 0.0
    %107 = vmatpush1.xpose.msra.mxu0 0.0
    %108 = vmatprep.subr.mxu0 0.0
    %109 = vmatpush1.xpose.msra.mxu0 0.0
    %110 = vmatprep.subr.mxu0 0.0
    %111 = vmatpush1.xpose.msra.mxu0 0.0
    %112 = vmatprep.subr.mxu0 0.0
    %113 = vmatpush1.xpose.msra.mxu0 0.0
    %114 = vmatprep.subr.mxu0 0.0
    %115 = vmatpush1.xpose.msra.mxu0 0.0
    %116 = vmatprep.subr.mxu0 0.0
    %117 = vmatpush1.xpose.msra.mxu0 0.0
    %118 = vmatprep.subr.mxu0 0.0
    %119 = vmatpush1.xpose.msra.mxu0 0.0
    %120 = vmatprep.subr.mxu0 0.0
    %121 = vmatpush1.xpose.msra.mxu0 0.0
    %122 = vmatprep.subr.mxu0 0.0
    %123 = vmatpush1.xpose.msra.mxu0 0.0
    %124 = vmatprep.subr.mxu0 0.0
    %125 = vmatpush1.xpose.msra.mxu0 0.0
    %126 = vmatprep.subr.mxu0 0.0
    %127 = vmatpush1.xpose.msra.mxu0 0.0
    %128 = vmatprep.subr.mxu0 0.0
    %129 = vmatpush1.xpose.msra.mxu0 0.0
    %130 = vmatprep.subr.mxu0 0.0
    %131 = vmatpush1.xpose.msra.mxu0 0.0
    %132 = vmatprep.subr.mxu0 0.0
    %133 = vmatpush1.xpose.msra.mxu0 0.0
    %134 = vmatprep.subr.mxu0 0.0
    %135 = vmatpush1.xpose.msra.mxu0 0.0
    %136 = vmatprep.subr.mxu0 0.0
    %137 = vmatpush1.xpose.msra.mxu0 0.0
    %138 = vmatprep.subr.mxu0 0.0
    %139 = vmatpush1.xpose.msra.mxu0 0.0
    %140 = vmatprep.subr.mxu0 0.0
    %141 = vmatpush1.xpose.msra.mxu0 0.0
    %142 = vmatprep.subr.mxu0 0.0
    %143 = vmatpush1.xpose.msra.mxu0 0.0
    %144 = vmatprep.subr.mxu0 0.0
    %145 = vmatpush1.xpose.msra.mxu0 0.0
    %146 = vmatprep.subr.mxu0 0.0
    %147 = vmatpush1.xpose.msra.mxu0 0.0
    %148 = vmatprep.subr.mxu0 0.0
    %149 = vmatpush1.xpose.msra.mxu0 0.0
    %150 = vmatprep.subr.mxu0 0.0
    %151 = vmatpush1.xpose.msra.mxu0 0.0
    %152 = vmatprep.subr.mxu0 0.0
    %153 = vmatpush1.xpose.msra.mxu0 0.0
    %154 = vmatprep.subr.mxu0 0.0
    %155 = vmatpush1.xpose.msra.mxu0 0.0
    %156 = vmatprep.subr.mxu0 0.0
    %157 = vmatpush1.xpose.msra.mxu0 0.0
    %158 = vmatprep.mubr.f32.mxu0 0.0
    %159 = vmatmul.mubr.f32.gmra.mrb[0].mxu0 %v83
    %v160 = vpop.f32.mrb[0].mxu0
    %v161 = vadd.f32 0.0, %v160
    %v162 = vpop.f32.mrb[0].mxu0
    %163 = vmatprep.mubr.f32.mxu0 0.0
    %164 = vmatmul.mubr.f32.gmra.mrb[0].mxu0 %v86
    %v165 = vpop.f32.mrb[0].mxu0
    %v166 = vadd.f32 0.0, %v165
    %v167 = vpop.f32.mrb[0].mxu0
    %168 = vdwg.mxu0
    %v169 = vmax.f32 %v161, -5.0
    %v170 = vmax.f32 %v166, -5.0
    %v171 = vmin.f32 %v169, 5.0
    %v172 = vmin.f32 %v170, 5.0
    %v173 = vmul.f32 %v171, 1.442695
    %v174 = vpow.pop %v173
    %v175 = vmul.f32 %v172, 1.442695
    %v176 = vpow.pop %v175
    %v177 = vmul.f32 %v174, %v73
    %v178 = vmul.f32 %v176, %v74
    %v179 = vld [vmem:[#allocation2] sm:$0xff]
    %v180 = vld [vmem:[#allocation2 + $0x8] sm:$0xff]
    %vm181 = vcmask 130048
    %v182 = vsel %vm181, %v177, 0.0
    %183 = vadd.xlane.f32.xlu0 %v182
    %v184 = vpop.xlane.xlu0 %183
    %v185 = vsel %vm181, %v178, 0.0
    %186 = vadd.xlane.f32.xlu0 %v185
    %v187 = vpop.xlane.xlu0 %186
    %v188 = vadd.f32 %v179, %v184
    %v189 = vadd.f32 %v180, %v187
    %vm190 = vcmask 7168
    %191 = vst.msk [vmem:[#allocation2] sm:$0xff] %vm190, %v188
    %192 = vst.msk [vmem:[#allocation2 + $0x8] sm:$0xff] %vm190, %v189
    %v193 = vld [vmem:[#allocation3] sm:$0xff]
    %v194 = vld [vmem:[#allocation3 + $0x8] sm:$0xff]
    %v196 = vsel %vm181, %v177, 0
    %v199 = vsel %vm181, %v178, 0
    %201 = vmatprep.subr.mxu0 0.0
    %202 = vmatpush1.msra.mxu0 %v79
    %203 = vmatprep.subr.mxu0 0.0
    %204 = vmatpush1.msra.mxu0 %v80
    %205 = vmatprep.subr.mxu0 0.0
    %206 = vmatpush1.msra.mxu0 0.0
    %207 = vmatprep.subr.mxu0 0.0
    %208 = vmatpush1.msra.mxu0 0.0
    %209 = vmatprep.subr.mxu0 0.0
    %210 = vmatpush1.msra.mxu0 0.0
    %211 = vmatprep.subr.mxu0 0.0
    %212 = vmatpush1.msra.mxu0 0.0
    %213 = vmatprep.subr.mxu0 0.0
    %214 = vmatpush1.msra.mxu0 0.0
    %215 = vmatprep.subr.mxu0 0.0
    %216 = vmatpush1.msra.mxu0 0.0
    %217 = vmatprep.subr.mxu0 0.0
    %218 = vmatpush1.msra.mxu0 0.0
    %219 = vmatprep.subr.mxu0 0.0
    %220 = vmatpush1.msra.mxu0 0.0
    %221 = vmatprep.subr.mxu0 0.0
    %222 = vmatpush1.msra.mxu0 0.0
    %223 = vmatprep.subr.mxu0 0.0
    %224 = vmatpush1.msra.mxu0 0.0
    %225 = vmatprep.subr.mxu0 0.0
    %226 = vmatpush1.msra.mxu0 0.0
    %227 = vmatprep.subr.mxu0 0.0
    %228 = vmatpush1.msra.mxu0 0.0
    %229 = vmatprep.subr.mxu0 0.0
    %230 = vmatpush1.msra.mxu0 0.0
    %231 = vmatprep.subr.mxu0 0.0
    %232 = vmatpush1.msra.mxu0 0.0
    %233 = vmatprep.subr.mxu0 0.0
    %234 = vmatpush1.msra.mxu0 0.0
    %235 = vmatprep.subr.mxu0 0.0
    %236 = vmatpush1.msra.mxu0 0.0
    %237 = vmatprep.subr.mxu0 0.0
    %238 = vmatpush1.msra.mxu0 0.0
    %239 = vmatprep.subr.mxu0 0.0
    %240 = vmatpush1.msra.mxu0 0.0
    %241 = vmatprep.subr.mxu0 0.0
    %242 = vmatpush1.msra.mxu0 0.0
    %243 = vmatprep.subr.mxu0 0.0
    %244 = vmatpush1.msra.mxu0 0.0
    %245 = vmatprep.subr.mxu0 0.0
    %246 = vmatpush1.msra.mxu0 0.0
    %247 = vmatprep.subr.mxu0 0.0
    %248 = vmatpush1.msra.mxu0 0.0
    %249 = vmatprep.subr.mxu0 0.0
    %250 = vmatpush1.msra.mxu0 0.0
    %251 = vmatprep.subr.mxu0 0.0
    %252 = vmatpush1.msra.mxu0 0.0
    %253 = vmatprep.subr.mxu0 0.0
    %254 = vmatpush1.msra.mxu0 0.0
    %255 = vmatprep.subr.mxu0 0.0
    %256 = vmatpush1.msra.mxu0 0.0
    %257 = vmatprep.subr.mxu0 0.0
    %258 = vmatpush1.msra.mxu0 0.0
    %259 = vmatprep.subr.mxu0 0.0
    %260 = vmatpush1.msra.mxu0 0.0
    %261 = vmatprep.subr.mxu0 0.0
    %262 = vmatpush1.msra.mxu0 0.0
    %263 = vmatprep.subr.mxu0 0.0
    %264 = vmatpush1.msra.mxu0 0.0
    %265 = vmatprep.mubr.f32.mxu0 0.0
    %266 = vmatmul.mubr.f32.gmra.mrb[0].mxu0 %v196
    %v267 = vpop.f32.mrb[0].mxu0
    %v268 = vadd.f32 0.0, %v267
    %v269 = vpop.f32.mrb[0].mxu0
    %270 = vmatprep.mubr.f32.mxu0 0.0
    %271 = vmatmul.mubr.f32.gmra.mrb[0].mxu0 %v199
    %v272 = vpop.f32.mrb[0].mxu0
    %v273 = vadd.f32 0.0, %v272
    %v274 = vpop.f32.mrb[0].mxu0
    %275 = vdwg.mxu0
    %v276 = vadd.f32 %v193, %v268
    %v277 = vadd.f32 %v194, %v273
    %278 = vst.msk [vmem:[#allocation3] sm:$0xff] %vm81, %v276
    %279 = vst.msk [vmem:[#allocation3 + $0x8] sm:$0xff] %vm81, %v277
    %280 = vrot.lane.b32.xlu0 %v75, 120
    %v281 = vpop.permute.xlu0 %280
    %282 = vrot.lane.b32.xlu0 %v76, 120
    %v283 = vpop.permute.xlu0 %282
    %284 = vrot.lane.b32.xlu0 %v77, 120
    %v285 = vpop.permute.xlu0 %284
    %286 = vrot.lane.b32.xlu0 %v78, 120
    %v287 = vpop.permute.xlu0 %286
    %v288 = vsel %vm81, %v281, 0
    %v290 = vsel %vm81, %v283, 0
    %v292 = vsel %vm81, %v285, 0
    %v294 = vsel %vm81, %v287, 0
    %296 = vmatprep.subr.mxu0 0.0
    %297 = vmatpush1.xpose.msra.mxu0 %v292
    %298 = vmatprep.subr.mxu0 0.0
    %299 = vmatpush1.xpose.msra.mxu0 %v294
    %300 = vmatprep.subr.mxu0 0.0
    %301 = vmatpush1.xpose.msra.mxu0 0.0
    %302 = vmatprep.subr.mxu0 0.0
    %303 = vmatpush1.xpose.msra.mxu0 0.0
    %304 = vmatprep.subr.mxu0 0.0
    %305 = vmatpush1.xpose.msra.mxu0 0.0
    %306 = vmatprep.subr.mxu0 0.0
    %307 = vmatpush1.xpose.msra.mxu0 0.0
    %308 = vmatprep.subr.mxu0 0.0
    %309 = vmatpush1.xpose.msra.mxu0 0.0
    %310 = vmatprep.subr.mxu0 0.0
    %311 = vmatpush1.xpose.msra.mxu0 0.0
    %312 = vmatprep.subr.mxu0 0.0
    %313 = vmatpush1.xpose.msra.mxu0 0.0
    %314 = vmatprep.subr.mxu0 0.0
    %315 = vmatpush1.xpose.msra.mxu0 0.0
    %316 = vmatprep.subr.mxu0 0.0
    %317 = vmatpush1.xpose.msra.mxu0 0.0
    %318 = vmatprep.subr.mxu0 0.0
    %319 = vmatpush1.xpose.msra.mxu0 0.0
    %320 = vmatprep.subr.mxu0 0.0
    %321 = vmatpush1.xpose.msra.mxu0 0.0
    %322 = vmatprep.subr.mxu0 0.0
    %323 = vmatpush1.xpose.msra.mxu0 0.0
    %324 = vmatprep.subr.mxu0 0.0
    %325 = vmatpush1.xpose.msra.mxu0 0.0
    %326 = vmatprep.subr.mxu0 0.0
    %327 = vmatpush1.xpose.msra.mxu0 0.0
    %328 = vmatprep.subr.mxu0 0.0
    %329 = vmatpush1.xpose.msra.mxu0 0.0
    %330 = vmatprep.subr.mxu0 0.0
    %331 = vmatpush1.xpose.msra.mxu0 0.0
    %332 = vmatprep.subr.mxu0 0.0
    %333 = vmatpush1.xpose.msra.mxu0 0.0
    %334 = vmatprep.subr.mxu0 0.0
    %335 = vmatpush1.xpose.msra.mxu0 0.0
    %336 = vmatprep.subr.mxu0 0.0
    %337 = vmatpush1.xpose.msra.mxu0 0.0
    %338 = vmatprep.subr.mxu0 0.0
    %339 = vmatpush1.xpose.msra.mxu0 0.0
    %340 = vmatprep.subr.mxu0 0.0
    %341 = vmatpush1.xpose.msra.mxu0 0.0
    %342 = vmatprep.subr.mxu0 0.0
    %343 = vmatpush1.xpose.msra.mxu0 0.0
    %344 = vmatprep.subr.mxu0 0.0
    %345 = vmatpush1.xpose.msra.mxu0 0.0
    %346 = vmatprep.subr.mxu0 0.0
    %347 = vmatpush1.xpose.msra.mxu0 0.0
    %348 = vmatprep.subr.mxu0 0.0
    %349 = vmatpush1.xpose.msra.mxu0 0.0
    %350 = vmatprep.subr.mxu0 0.0
    %351 = vmatpush1.xpose.msra.mxu0 0.0
    %352 = vmatprep.subr.mxu0 0.0
    %353 = vmatpush1.xpose.msra.mxu0 0.0
    %354 = vmatprep.subr.mxu0 0.0
    %355 = vmatpush1.xpose.msra.mxu0 0.0
    %356 = vmatprep.subr.mxu0 0.0
    %357 = vmatpush1.xpose.msra.mxu0 0.0
    %358 = vmatprep.subr.mxu0 0.0
    %359 = vmatpush1.xpose.msra.mxu0 0.0
    %360 = vmatprep.mubr.f32.mxu0 0.0
    %361 = vmatmul.mubr.f32.gmra.mrb[0].mxu0 %v288
    %v362 = vpop.f32.mrb[0].mxu0
    %v363 = vadd.f32 0.0, %v362
    %v364 = vpop.f32.mrb[0].mxu0
    %365 = vmatprep.mubr.f32.mxu0 0.0
    %366 = vmatmul.mubr.f32.gmra.mrb[0].mxu0 %v290
    %v367 = vpop.f32.mrb[0].mxu0
    %v368 = vadd.f32 0.0, %v367
    %v369 = vpop.f32.mrb[0].mxu0
    %370 = vdwg.mxu0
    %v371 = vmax.f32 %v363, -5.0
    %v372 = vmax.f32 %v368, -5.0
    %v373 = vmin.f32 %v371, 5.0
    %v374 = vmin.f32 %v372, 5.0
    %v375 = vmul.f32 %v373, 1.442695
    %v376 = vpow.pop %v375
    %v377 = vmul.f32 %v374, 1.442695
    %v378 = vpow.pop %v377
    %v379 = vmul.f32 %v376, %v73
    %v380 = vmul.f32 %v378, %v74
    %v381 = vld [vmem:[#allocation2] sm:$0xff]
    %v382 = vld [vmem:[#allocation2 + $0x8] sm:$0xff]
    %v383 = vsel %vm181, %v379, 0.0
    %384 = vadd.xlane.f32.xlu0 %v383
    %v385 = vpop.xlane.xlu0 %384
    %v386 = vsel %vm181, %v380, 0.0
    %387 = vadd.xlane.f32.xlu0 %v386
    %v388 = vpop.xlane.xlu0 %387
    %v389 = vadd.f32 %v381, %v385
    %v390 = vadd.f32 %v382, %v388
    %vm391 = vcmask 15368
    %392 = vst.msk [vmem:[#allocation2] sm:$0xff] %vm391, %v389
    %393 = vst.msk [vmem:[#allocation2 + $0x8] sm:$0xff] %vm391, %v390
    %v394 = vld [vmem:[#allocation3] sm:$0xff]
    %v395 = vld [vmem:[#allocation3 + $0x8] sm:$0xff]
    %398 = vrot.lane.b32.xlu0 %v79, 120
    %v399 = vpop.permute.xlu0 %398
    %400 = vrot.lane.b32.xlu0 %v80, 120
    %v401 = vpop.permute.xlu0 %400
    %v405 = vsel %vm181, %v379, 0
    %v408 = vsel %vm181, %v380, 0
    %410 = vmatprep.subr.mxu0 0.0
    %411 = vmatpush1.msra.mxu0 %v399
    %412 = vmatprep.subr.mxu0 0.0
    %413 = vmatpush1.msra.mxu0 %v401
    %414 = vmatprep.subr.mxu0 0.0
    %415 = vmatpush1.msra.mxu0 0.0
    %416 = vmatprep.subr.mxu0 0.0
    %417 = vmatpush1.msra.mxu0 0.0
    %418 = vmatprep.subr.mxu0 0.0
    %419 = vmatpush1.msra.mxu0 0.0
    %420 = vmatprep.subr.mxu0 0.0
    %421 = vmatpush1.msra.mxu0 0.0
    %422 = vmatprep.subr.mxu0 0.0
    %423 = vmatpush1.msra.mxu0 0.0
    %424 = vmatprep.subr.mxu0 0.0
    %425 = vmatpush1.msra.mxu0 0.0
    %426 = vmatprep.subr.mxu0 0.0
    %427 = vmatpush1.msra.mxu0 0.0
    %428 = vmatprep.subr.mxu0 0.0
    %429 = vmatpush1.msra.mxu0 0.0
    %430 = vmatprep.subr.mxu0 0.0
    %431 = vmatpush1.msra.mxu0 0.0
    %432 = vmatprep.subr.mxu0 0.0
    %433 = vmatpush1.msra.mxu0 0.0
    %434 = vmatprep.subr.mxu0 0.0
    %435 = vmatpush1.msra.mxu0 0.0
    %436 = vmatprep.subr.mxu0 0.0
    %437 = vmatpush1.msra.mxu0 0.0
    %438 = vmatprep.subr.mxu0 0.0
    %439 = vmatpush1.msra.mxu0 0.0
    %440 = vmatprep.subr.mxu0 0.0
    %441 = vmatpush1.msra.mxu0 0.0
    %442 = vmatprep.subr.mxu0 0.0
    %443 = vmatpush1.msra.mxu0 0.0
    %444 = vmatprep.subr.mxu0 0.0
    %445 = vmatpush1.msra.mxu0 0.0
    %446 = vmatprep.subr.mxu0 0.0
    %447 = vmatpush1.msra.mxu0 0.0
    %448 = vmatprep.subr.mxu0 0.0
    %449 = vmatpush1.msra.mxu0 0.0
    %450 = vmatprep.subr.mxu0 0.0
    %451 = vmatpush1.msra.mxu0 0.0
    %452 = vmatprep.subr.mxu0 0.0
    %453 = vmatpush1.msra.mxu0 0.0
    %454 = vmatprep.subr.mxu0 0.0
    %455 = vmatpush1.msra.mxu0 0.0
    %456 = vmatprep.subr.mxu0 0.0
    %457 = vmatpush1.msra.mxu0 0.0
    %458 = vmatprep.subr.mxu0 0.0
    %459 = vmatpush1.msra.mxu0 0.0
    %460 = vmatprep.subr.mxu0 0.0
    %461 = vmatpush1.msra.mxu0 0.0
    %462 = vmatprep.subr.mxu0 0.0
    %463 = vmatpush1.msra.mxu0 0.0
    %464 = vmatprep.subr.mxu0 0.0
    %465 = vmatpush1.msra.mxu0 0.0
    %466 = vmatprep.subr.mxu0 0.0
    %467 = vmatpush1.msra.mxu0 0.0
    %468 = vmatprep.subr.mxu0 0.0
    %469 = vmatpush1.msra.mxu0 0.0
    %470 = vmatprep.subr.mxu0 0.0
    %471 = vmatpush1.msra.mxu0 0.0
    %472 = vmatprep.subr.mxu0 0.0
    %473 = vmatpush1.msra.mxu0 0.0
    %474 = vmatprep.mubr.f32.mxu0 0.0
    %475 = vmatmul.mubr.f32.gmra.mrb[0].mxu0 %v405
    %v476 = vpop.f32.mrb[0].mxu0
    %v477 = vadd.f32 0.0, %v476
    %v478 = vpop.f32.mrb[0].mxu0
    %479 = vmatprep.mubr.f32.mxu0 0.0
    %480 = vmatmul.mubr.f32.gmra.mrb[0].mxu0 %v408
    %v481 = vpop.f32.mrb[0].mxu0
    %v482 = vadd.f32 0.0, %v481
    %v483 = vpop.f32.mrb[0].mxu0
    %484 = vdwg.mxu0
    %487 = vrot.lane.b32.xlu0 %v477, 8
    %v488 = vpop.permute.xlu0 %487
    %489 = vrot.lane.b32.xlu0 %v482, 8
    %v490 = vpop.permute.xlu0 %489
    %v493 = vadd.f32 %v394, %v488
    %v494 = vadd.f32 %v395, %v490
    %vm495 = vcmask 130112
    %496 = vst.msk [vmem:[#allocation3] sm:$0xff] %vm495, %v493
    %497 = vst.msk [vmem:[#allocation3 + $0x8] sm:$0xff] %vm495, %v494
    %498 = vrot.lane.b32.xlu0 %v75, 112
    %v499 = vpop.permute.xlu0 %498
    %500 = vrot.lane.b32.xlu0 %v76, 112
    %v501 = vpop.permute.xlu0 %500
    %502 = vrot.lane.b32.xlu0 %v77, 112
    %v503 = vpop.permute.xlu0 %502
    %504 = vrot.lane.b32.xlu0 %v78, 112
    %v505 = vpop.permute.xlu0 %504
    %v506 = vsel %vm81, %v499, 0
    %v508 = vsel %vm81, %v501, 0
    %v510 = vsel %vm81, %v503, 0
    %v512 = vsel %vm81, %v505, 0
    %514 = vmatprep.subr.mxu0 0.0
    %515 = vmatpush1.xpose.msra.mxu0 %v510
    %516 = vmatprep.subr.mxu0 0.0
    %517 = vmatpush1.xpose.msra.mxu0 %v512
    %518 = vmatprep.subr.mxu0 0.0
    %519 = vmatpush1.xpose.msra.mxu0 0.0
    %520 = vmatprep.subr.mxu0 0.0
    %521 = vmatpush1.xpose.msra.mxu0 0.0
    %522 = vmatprep.subr.mxu0 0.0
    %523 = vmatpush1.xpose.msra.mxu0 0.0
    %524 = vmatprep.subr.mxu0 0.0
    %525 = vmatpush1.xpose.msra.mxu0 0.0
    %526 = vmatprep.subr.mxu0 0.0
    %527 = vmatpush1.xpose.msra.mxu0 0.0
    %528 = vmatprep.subr.mxu0 0.0
    %529 = vmatpush1.xpose.msra.mxu0 0.0
    %530 = vmatprep.subr.mxu0 0.0
    %531 = vmatpush1.xpose.msra.mxu0 0.0
    %532 = vmatprep.subr.mxu0 0.0
    %533 = vmatpush1.xpose.msra.mxu0 0.0
    %534 = vmatprep.subr.mxu0 0.0
    %535 = vmatpush1.xpose.msra.mxu0 0.0
    %536 = vmatprep.subr.mxu0 0.0
    %537 = vmatpush1.xpose.msra.mxu0 0.0
    %538 = vmatprep.subr.mxu0 0.0
    %539 = vmatpush1.xpose.msra.mxu0 0.0
    %540 = vmatprep.subr.mxu0 0.0
    %541 = vmatpush1.xpose.msra.mxu0 0.0
    %542 = vmatprep.subr.mxu0 0.0
    %543 = vmatpush1.xpose.msra.mxu0 0.0
    %544 = vmatprep.subr.mxu0 0.0
    %545 = vmatpush1.xpose.msra.mxu0 0.0
    %546 = vmatprep.subr.mxu0 0.0
    %547 = vmatpush1.xpose.msra.mxu0 0.0
    %548 = vmatprep.subr.mxu0 0.0
    %549 = vmatpush1.xpose.msra.mxu0 0.0
    %550 = vmatprep.subr.mxu0 0.0
    %551 = vmatpush1.xpose.msra.mxu0 0.0
    %552 = vmatprep.subr.mxu0 0.0
    %553 = vmatpush1.xpose.msra.mxu0 0.0
    %554 = vmatprep.subr.mxu0 0.0
    %555 = vmatpush1.xpose.msra.mxu0 0.0
    %556 = vmatprep.subr.mxu0 0.0
    %557 = vmatpush1.xpose.msra.mxu0 0.0
    %558 = vmatprep.subr.mxu0 0.0
    %559 = vmatpush1.xpose.msra.mxu0 0.0
    %560 = vmatprep.subr.mxu0 0.0
    %561 = vmatpush1.xpose.msra.mxu0 0.0
    %562 = vmatprep.subr.mxu0 0.0
    %563 = vmatpush1.xpose.msra.mxu0 0.0
    %564 = vmatprep.subr.mxu0 0.0
    %565 = vmatpush1.xpose.msra.mxu0 0.0
    %566 = vmatprep.subr.mxu0 0.0
    %567 = vmatpush1.xpose.msra.mxu0 0.0
    %568 = vmatprep.subr.mxu0 0.0
    %569 = vmatpush1.xpose.msra.mxu0 0.0
    %570 = vmatprep.subr.mxu0 0.0
    %571 = vmatpush1.xpose.msra.mxu0 0.0
    %572 = vmatprep.subr.mxu0 0.0
    %573 = vmatpush1.xpose.msra.mxu0 0.0
    %574 = vmatprep.subr.mxu0 0.0
    %575 = vmatpush1.xpose.msra.mxu0 0.0
    %576 = vmatprep.subr.mxu0 0.0
    %577 = vmatpush1.xpose.msra.mxu0 0.0
    %578 = vmatprep.mubr.f32.mxu0 0.0
    %579 = vmatmul.mubr.f32.gmra.mrb[0].mxu0 %v506
    %v580 = vpop.f32.mrb[0].mxu0
    %v581 = vadd.f32 0.0, %v580
    %v582 = vpop.f32.mrb[0].mxu0
    %583 = vmatprep.mubr.f32.mxu0 0.0
    %584 = vmatmul.mubr.f32.gmra.mrb[0].mxu0 %v508
    %v585 = vpop.f32.mrb[0].mxu0
    %v586 = vadd.f32 0.0, %v585
    %v587 = vpop.f32.mrb[0].mxu0
    %588 = vdwg.mxu0
    %v589 = vmax.f32 %v581, -5.0
    %v590 = vmax.f32 %v586, -5.0
    %v591 = vmin.f32 %v589, 5.0
    %v592 = vmin.f32 %v590, 5.0
    %v593 = vmul.f32 %v591, 1.442695
    %v594 = vpow.pop %v593
    %v595 = vmul.f32 %v592, 1.442695
    %v596 = vpow.pop %v595
    %v597 = vmul.f32 %v594, %v73
    %v598 = vmul.f32 %v596, %v74
    %v599 = vld [vmem:[#allocation2] sm:$0xff]
    %v600 = vld [vmem:[#allocation2 + $0x8] sm:$0xff]
    %v601 = vsel %vm181, %v597, 0.0
    %602 = vadd.xlane.f32.xlu0 %v601
    %v603 = vpop.xlane.xlu0 %602
    %v604 = vsel %vm181, %v598, 0.0
    %605 = vadd.xlane.f32.xlu0 %v604
    %v606 = vpop.xlane.xlu0 %605
    %v607 = vadd.f32 %v599, %v603
    %v608 = vadd.f32 %v600, %v606
    %vm609 = vcmask 23568
    %610 = vst.msk [vmem:[#allocation2] sm:$0xff] %vm609, %v607
    %611 = vst.msk [vmem:[#allocation2 + $0x8] sm:$0xff] %vm609, %v608
    %v612 = vld [vmem:[#allocation3] sm:$0xff]
    %v613 = vld [vmem:[#allocation3 + $0x8] sm:$0xff]
    %614 = vrot.lane.b32.xlu0 %v79, 112
    %v615 = vpop.permute.xlu0 %614
    %616 = vrot.lane.b32.xlu0 %v80, 112
    %v617 = vpop.permute.xlu0 %616
    %v621 = vsel %vm181, %v597, 0
    %v624 = vsel %vm181, %v598, 0
    %626 = vmatprep.subr.mxu0 0.0
    %627 = vmatpush1.msra.mxu0 %v615
    %628 = vmatprep.subr.mxu0 0.0
    %629 = vmatpush1.msra.mxu0 %v617
    %630 = vmatprep.subr.mxu0 0.0
    %631 = vmatpush1.msra.mxu0 0.0
    %632 = vmatprep.subr.mxu0 0.0
    %633 = vmatpush1.msra.mxu0 0.0
    %634 = vmatprep.subr.mxu0 0.0
    %635 = vmatpush1.msra.mxu0 0.0
    %636 = vmatprep.subr.mxu0 0.0
    %637 = vmatpush1.msra.mxu0 0.0
    %638 = vmatprep.subr.mxu0 0.0
    %639 = vmatpush1.msra.mxu0 0.0
    %640 = vmatprep.subr.mxu0 0.0
    %641 = vmatpush1.msra.mxu0 0.0
    %642 = vmatprep.subr.mxu0 0.0
    %643 = vmatpush1.msra.mxu0 0.0
    %644 = vmatprep.subr.mxu0 0.0
    %645 = vmatpush1.msra.mxu0 0.0
    %646 = vmatprep.subr.mxu0 0.0
    %647 = vmatpush1.msra.mxu0 0.0
    %648 = vmatprep.subr.mxu0 0.0
    %649 = vmatpush1.msra.mxu0 0.0
    %650 = vmatprep.subr.mxu0 0.0
    %651 = vmatpush1.msra.mxu0 0.0
    %652 = vmatprep.subr.mxu0 0.0
    %653 = vmatpush1.msra.mxu0 0.0
    %654 = vmatprep.subr.mxu0 0.0
    %655 = vmatpush1.msra.mxu0 0.0
    %656 = vmatprep.subr.mxu0 0.0
    %657 = vmatpush1.msra.mxu0 0.0
    %658 = vmatprep.subr.mxu0 0.0
    %659 = vmatpush1.msra.mxu0 0.0
    %660 = vmatprep.subr.mxu0 0.0
    %661 = vmatpush1.msra.mxu0 0.0
    %662 = vmatprep.subr.mxu0 0.0
    %663 = vmatpush1.msra.mxu0 0.0
    %664 = vmatprep.subr.mxu0 0.0
    %665 = vmatpush1.msra.mxu0 0.0
    %666 = vmatprep.subr.mxu0 0.0
    %667 = vmatpush1.msra.mxu0 0.0
    %668 = vmatprep.subr.mxu0 0.0
    %669 = vmatpush1.msra.mxu0 0.0
    %670 = vmatprep.subr.mxu0 0.0
    %671 = vmatpush1.msra.mxu0 0.0
    %672 = vmatprep.subr.mxu0 0.0
    %673 = vmatpush1.msra.mxu0 0.0
    %674 = vmatprep.subr.mxu0 0.0
    %675 = vmatpush1.msra.mxu0 0.0
    %676 = vmatprep.subr.mxu0 0.0
    %677 = vmatpush1.msra.mxu0 0.0
    %678 = vmatprep.subr.mxu0 0.0
    %679 = vmatpush1.msra.mxu0 0.0
    %680 = vmatprep.subr.mxu0 0.0
    %681 = vmatpush1.msra.mxu0 0.0
    %682 = vmatprep.subr.mxu0 0.0
    %683 = vmatpush1.msra.mxu0 0.0
    %684 = vmatprep.subr.mxu0 0.0
    %685 = vmatpush1.msra.mxu0 0.0
    %686 = vmatprep.subr.mxu0 0.0
    %687 = vmatpush1.msra.mxu0 0.0
    %688 = vmatprep.subr.mxu0 0.0
    %689 = vmatpush1.msra.mxu0 0.0
    %690 = vmatprep.mubr.f32.mxu0 0.0
    %691 = vmatmul.mubr.f32.gmra.mrb[0].mxu0 %v621
    %v692 = vpop.f32.mrb[0].mxu0
    %v693 = vadd.f32 0.0, %v692
    %v694 = vpop.f32.mrb[0].mxu0
    %695 = vmatprep.mubr.f32.mxu0 0.0
    %696 = vmatmul.mubr.f32.gmra.mrb[0].mxu0 %v624
    %v697 = vpop.f32.mrb[0].mxu0
    %v698 = vadd.f32 0.0, %v697
    %v699 = vpop.f32.mrb[0].mxu0
    %700 = vdwg.mxu0
    %703 = vrot.lane.b32.xlu0 %v693, 16
    %v704 = vpop.permute.xlu0 %703
    %705 = vrot.lane.b32.xlu0 %v698, 16
    %v706 = vpop.permute.xlu0 %705
    %v709 = vadd.f32 %v612, %v704
    %v710 = vadd.f32 %v613, %v706
    %vm711 = vcmask 195712
    %712 = vst.msk [vmem:[#allocation3] sm:$0xff] %vm711, %v709
    %713 = vst.msk [vmem:[#allocation3 + $0x8] sm:$0xff] %vm711, %v710
    %714 = vrot.lane.b32.xlu0 %v75, 104
    %v715 = vpop.permute.xlu0 %714
    %716 = vrot.lane.b32.xlu0 %v76, 104
    %v717 = vpop.permute.xlu0 %716
    %718 = vrot.lane.b32.xlu0 %v77, 104
    %v719 = vpop.permute.xlu0 %718
    %720 = vrot.lane.b32.xlu0 %v78, 104
    %v721 = vpop.permute.xlu0 %720
    %v722 = vsel %vm81, %v715, 0
    %v724 = vsel %vm81, %v717, 0
    %v726 = vsel %vm81, %v719, 0
    %v728 = vsel %vm81, %v721, 0
    %730 = vmatprep.subr.mxu0 0.0
    %731 = vmatpush1.xpose.msra.mxu0 %v726
    %732 = vmatprep.subr.mxu0 0.0
    %733 = vmatpush1.xpose.msra.mxu0 %v728
    %734 = vmatprep.subr.mxu0 0.0
    %735 = vmatpush1.xpose.msra.mxu0 0.0
    %736 = vmatprep.subr.mxu0 0.0
    %737 = vmatpush1.xpose.msra.mxu0 0.0
    %738 = vmatprep.subr.mxu0 0.0
    %739 = vmatpush1.xpose.msra.mxu0 0.0
    %740 = vmatprep.subr.mxu0 0.0
    %741 = vmatpush1.xpose.msra.mxu0 0.0
    %742 = vmatprep.subr.mxu0 0.0
    %743 = vmatpush1.xpose.msra.mxu0 0.0
    %744 = vmatprep.subr.mxu0 0.0
    %745 = vmatpush1.xpose.msra.mxu0 0.0
    %746 = vmatprep.subr.mxu0 0.0
    %747 = vmatpush1.xpose.msra.mxu0 0.0
    %748 = vmatprep.subr.mxu0 0.0
    %749 = vmatpush1.xpose.msra.mxu0 0.0
    %750 = vmatprep.subr.mxu0 0.0
    %751 = vmatpush1.xpose.msra.mxu0 0.0
    %752 = vmatprep.subr.mxu0 0.0
    %753 = vmatpush1.xpose.msra.mxu0 0.0
    %754 = vmatprep.subr.mxu0 0.0
    %755 = vmatpush1.xpose.msra.mxu0 0.0
    %756 = vmatprep.subr.mxu0 0.0
    %757 = vmatpush1.xpose.msra.mxu0 0.0
    %758 = vmatprep.subr.mxu0 0.0
    %759 = vmatpush1.xpose.msra.mxu0 0.0
    %760 = vmatprep.subr.mxu0 0.0
    %761 = vmatpush1.xpose.msra.mxu0 0.0
    %762 = vmatprep.subr.mxu0 0.0
    %763 = vmatpush1.xpose.msra.mxu0 0.0
    %764 = vmatprep.subr.mxu0 0.0
    %765 = vmatpush1.xpose.msra.mxu0 0.0
    %766 = vmatprep.subr.mxu0 0.0
    %767 = vmatpush1.xpose.msra.mxu0 0.0
    %768 = vmatprep.subr.mxu0 0.0
    %769 = vmatpush1.xpose.msra.mxu0 0.0
    %770 = vmatprep.subr.mxu0 0.0
    %771 = vmatpush1.xpose.msra.mxu0 0.0
    %772 = vmatprep.subr.mxu0 0.0
    %773 = vmatpush1.xpose.msra.mxu0 0.0
    %774 = vmatprep.subr.mxu0 0.0
    %775 = vmatpush1.xpose.msra.mxu0 0.0
    %776 = vmatprep.subr.mxu0 0.0
    %777 = vmatpush1.xpose.msra.mxu0 0.0
    %778 = vmatprep.subr.mxu0 0.0
    %779 = vmatpush1.xpose.msra.mxu0 0.0
    %780 = vmatprep.subr.mxu0 0.0
    %781 = vmatpush1.xpose.msra.mxu0 0.0
    %782 = vmatprep.subr.mxu0 0.0
    %783 = vmatpush1.xpose.msra.mxu0 0.0
    %784 = vmatprep.subr.mxu0 0.0
    %785 = vmatpush1.xpose.msra.mxu0 0.0
    %786 = vmatprep.subr.mxu0 0.0
    %787 = vmatpush1.xpose.msra.mxu0 0.0
    %788 = vmatprep.subr.mxu0 0.0
    %789 = vmatpush1.xpose.msra.mxu0 0.0
    %790 = vmatprep.subr.mxu0 0.0
    %791 = vmatpush1.xpose.msra.mxu0 0.0
    %792 = vmatprep.subr.mxu0 0.0
    %793 = vmatpush1.xpose.msra.mxu0 0.0
    %794 = vmatprep.mubr.f32.mxu0 0.0
    %795 = vmatmul.mubr.f32.gmra.mrb[0].mxu0 %v722
    %v796 = vpop.f32.mrb[0].mxu0
    %v797 = vadd.f32 0.0, %v796
    %v798 = vpop.f32.mrb[0].mxu0
    %799 = vmatprep.mubr.f32.mxu0 0.0
    %800 = vmatmul.mubr.f32.gmra.mrb[0].mxu0 %v724
    %v801 = vpop.f32.mrb[0].mxu0
    %v802 = vadd.f32 0.0, %v801
    %v803 = vpop.f32.mrb[0].mxu0
    %804 = vdwg.mxu0
    %v805 = vmax.f32 %v797, -5.0
    %v806 = vmax.f32 %v802, -5.0
    %v807 = vmin.f32 %v805, 5.0
    %v808 = vmin.f32 %v806, 5.0
    %v809 = vmul.f32 %v807, 1.442695
    %v810 = vpow.pop %v809
    %v811 = vmul.f32 %v808, 1.442695
    %v812 = vpow.pop %v811
    %v813 = vmul.f32 %v810, %v73
    %v814 = vmul.f32 %v812, %v74
    %v815 = vld [vmem:[#allocation2] sm:$0xff]
    %v816 = vld [vmem:[#allocation2 + $0x8] sm:$0xff]
    %v817 = vsel %vm181, %v813, 0.0
    %818 = vadd.xlane.f32.xlu0 %v817
    %v819 = vpop.xlane.xlu0 %818
    %v820 = vsel %vm181, %v814, 0.0
    %821 = vadd.xlane.f32.xlu0 %v820
    %v822 = vpop.xlane.xlu0 %821
    %v823 = vadd.f32 %v815, %v819
    %v824 = vadd.f32 %v816, %v822
    %vm825 = vcmask 31768
    %826 = vst.msk [vmem:[#allocation2] sm:$0xff] %vm825, %v823
    %827 = vst.msk [vmem:[#allocation2 + $0x8] sm:$0xff] %vm825, %v824
    %v828 = vld [vmem:[#allocation3] sm:$0xff]
    %v829 = vld [vmem:[#allocation3 + $0x8] sm:$0xff]
    %830 = vrot.lane.b32.xlu0 %v79, 104
    %v831 = vpop.permute.xlu0 %830
    %832 = vrot.lane.b32.xlu0 %v80, 104
    %v833 = vpop.permute.xlu0 %832
    %v837 = vsel %vm181, %v813, 0
    %v840 = vsel %vm181, %v814, 0
    %842 = vmatprep.subr.mxu0 0.0
    %843 = vmatpush1.msra.mxu0 %v831
    %844 = vmatprep.subr.mxu0 0.0
    %845 = vmatpush1.msra.mxu0 %v833
    %846 = vmatprep.subr.mxu0 0.0
    %847 = vmatpush1.msra.mxu0 0.0
    %848 = vmatprep.subr.mxu0 0.0
    %849 = vmatpush1.msra.mxu0 0.0
    %850 = vmatprep.subr.mxu0 0.0
    %851 = vmatpush1.msra.mxu0 0.0
    %852 = vmatprep.subr.mxu0 0.0
    %853 = vmatpush1.msra.mxu0 0.0
    %854 = vmatprep.subr.mxu0 0.0
    %855 = vmatpush1.msra.mxu0 0.0
    %856 = vmatprep.subr.mxu0 0.0
    %857 = vmatpush1.msra.mxu0 0.0
    %858 = vmatprep.subr.mxu0 0.0
    %859 = vmatpush1.msra.mxu0 0.0
    %860 = vmatprep.subr.mxu0 0.0
    %861 = vmatpush1.msra.mxu0 0.0
    %862 = vmatprep.subr.mxu0 0.0
    %863 = vmatpush1.msra.mxu0 0.0
    %864 = vmatprep.subr.mxu0 0.0
    %865 = vmatpush1.msra.mxu0 0.0
    %866 = vmatprep.subr.mxu0 0.0
    %867 = vmatpush1.msra.mxu0 0.0
    %868 = vmatprep.subr.mxu0 0.0
    %869 = vmatpush1.msra.mxu0 0.0
    %870 = vmatprep.subr.mxu0 0.0
    %871 = vmatpush1.msra.mxu0 0.0
    %872 = vmatprep.subr.mxu0 0.0
    %873 = vmatpush1.msra.mxu0 0.0
    %874 = vmatprep.subr.mxu0 0.0
    %875 = vmatpush1.msra.mxu0 0.0
    %876 = vmatprep.subr.mxu0 0.0
    %877 = vmatpush1.msra.mxu0 0.0
    %878 = vmatprep.subr.mxu0 0.0
    %879 = vmatpush1.msra.mxu0 0.0
    %880 = vmatprep.subr.mxu0 0.0
    %881 = vmatpush1.msra.mxu0 0.0
    %882 = vmatprep.subr.mxu0 0.0
    %883 = vmatpush1.msra.mxu0 0.0
    %884 = vmatprep.subr.mxu0 0.0
    %885 = vmatpush1.msra.mxu0 0.0
    %886 = vmatprep.subr.mxu0 0.0
    %887 = vmatpush1.msra.mxu0 0.0
    %888 = vmatprep.subr.mxu0 0.0
    %889 = vmatpush1.msra.mxu0 0.0
    %890 = vmatprep.subr.mxu0 0.0
    %891 = vmatpush1.msra.mxu0 0.0
    %892 = vmatprep.subr.mxu0 0.0
    %893 = vmatpush1.msra.mxu0 0.0
    %894 = vmatprep.subr.mxu0 0.0
    %895 = vmatpush1.msra.mxu0 0.0
    %896 = vmatprep.subr.mxu0 0.0
    %897 = vmatpush1.msra.mxu0 0.0
    %898 = vmatprep.subr.mxu0 0.0
    %899 = vmatpush1.msra.mxu0 0.0
    %900 = vmatprep.subr.mxu0 0.0
    %901 = vmatpush1.msra.mxu0 0.0
    %902 = vmatprep.subr.mxu0 0.0
    %903 = vmatpush1.msra.mxu0 0.0
    %904 = vmatprep.subr.mxu0 0.0
    %905 = vmatpush1.msra.mxu0 0.0
    %906 = vmatprep.mubr.f32.mxu0 0.0
    %907 = vmatmul.mubr.f32.gmra.mrb[0].mxu0 %v837
    %v908 = vpop.f32.mrb[0].mxu0
    %v909 = vadd.f32 0.0, %v908
    %v910 = vpop.f32.mrb[0].mxu0
    %911 = vmatprep.mubr.f32.mxu0 0.0
    %912 = vmatmul.mubr.f32.gmra.mrb[0].mxu0 %v840
    %v913 = vpop.f32.mrb[0].mxu0
    %v914 = vadd.f32 0.0, %v913
    %v915 = vpop.f32.mrb[0].mxu0
    %916 = vdwg.mxu0
    %919 = vrot.lane.b32.xlu0 %v909, 24
    %v920 = vpop.permute.xlu0 %919
    %921 = vrot.lane.b32.xlu0 %v914, 24
    %v922 = vpop.permute.xlu0 %921
    %v925 = vadd.f32 %v828, %v920
    %v926 = vadd.f32 %v829, %v922
    %vm927 = vcmask 261312
    %928 = vst.msk [vmem:[#allocation3] sm:$0xff] %vm927, %v925
    %929 = vst.msk [vmem:[#allocation3 + $0x8] sm:$0xff] %vm927, %v926
    // Predicated region
    $region34: #{tpu_custom_call.1} parent=1 // pred_check
      %p930 = pneg %p59
    $region35: #{tpu_custom_call.1} parent=1 // pred_check_branch
      %932 = sbr.rel (%p930) target = $region37
    $region36: #{tpu_custom_call.1} parent=1 // pred_region
      %v933 = vld [vmem:[#allocation2] sm:$0xff]
      %v934 = vld [vmem:[#allocation2 + $0x8] sm:$0xff]
      %vm935 = vcmp.gt.f32.partialorder %v933, 0.0
      %vm936 = vcmp.gt.f32.partialorder %v934, 0.0
      %v937 = vsel %vm935, %v933, 1.0
      %v938 = vsel %vm936, %v934, 1.0
      %v939 = vld [vmem:[#allocation3] sm:$0xff]
      %v940 = vld [vmem:[#allocation3 + $0x8] sm:$0xff]
      %942 = vset.pattern.permute.xlu0 0
      %943 = vperm.xlu0 %942, %v937
      %v944 = vpop.permute.xlu0 %943
      %947 = vset.pattern.permute.xlu0 0
      %948 = vperm.xlu0 %947, %v938
      %v949 = vpop.permute.xlu0 %948
      %v951 = vrcp.pop %v944
      %v952 = vmul.f32 %v939, %v951
      %v953 = vrcp.pop %v949
      %v954 = vmul.f32 %v940, %v953
      %955 = vst.msk [vmem:[#allocation10] sm:$0xff] %vm81, %v952
      %956 = vst.msk [vmem:[#allocation10 + $0x8] sm:$0xff] %vm81, %v954
      %v957 = vld [vmem:[#allocation2] sm:$0xff]
      %v958 = vld [vmem:[#allocation2 + $0x8] sm:$0xff]
      %vm959 = vcmp.gt.f32.partialorder %v957, 0.0
      %vm960 = vcmp.gt.f32.partialorder %v958, 0.0
      %v961 = vsel %vm959, %v957, 1.0
      %v962 = vsel %vm960, %v958, 1.0
      %v963 = vld [vmem:[#allocation3] sm:$0xff]
      %v964 = vld [vmem:[#allocation3 + $0x8] sm:$0xff]
      %966 = vset.pattern.permute.xlu0 1
      %967 = vperm.xlu0 %966, %v961
      %v968 = vpop.permute.xlu0 %967
      %971 = vset.pattern.permute.xlu0 1
      %972 = vperm.xlu0 %971, %v962
      %v973 = vpop.permute.xlu0 %972
      %v975 = vrcp.pop %v968
      %v976 = vmul.f32 %v963, %v975
      %v977 = vrcp.pop %v973
      %v978 = vmul.f32 %v964, %v977
      %979 = vst.msk [vmem:[#allocation10] sm:$0xff] %vm495, %v976
      %980 = vst.msk [vmem:[#allocation10 + $0x8] sm:$0xff] %vm495, %v978
      %v981 = vld [vmem:[#allocation2] sm:$0xff]
      %v982 = vld [vmem:[#allocation2 + $0x8] sm:$0xff]
      %vm983 = vcmp.gt.f32.partialorder %v981, 0.0
      %vm984 = vcmp.gt.f32.partialorder %v982, 0.0
      %v985 = vsel %vm983, %v981, 1.0
      %v986 = vsel %vm984, %v982, 1.0
      %v987 = vld [vmem:[#allocation3] sm:$0xff]
      %v988 = vld [vmem:[#allocation3 + $0x8] sm:$0xff]
      %990 = vset.pattern.permute.xlu0 2
      %991 = vperm.xlu0 %990, %v985
      %v992 = vpop.permute.xlu0 %991
      %995 = vset.pattern.permute.xlu0 2
      %996 = vperm.xlu0 %995, %v986
      %v997 = vpop.permute.xlu0 %996
      %v999 = vrcp.pop %v992
      %v1000 = vmul.f32 %v987, %v999
      %v1001 = vrcp.pop %v997
      %v1002 = vmul.f32 %v988, %v1001
      %1003 = vst.msk [vmem:[#allocation10] sm:$0xff] %vm711, %v1000
      %1004 = vst.msk [vmem:[#allocation10 + $0x8] sm:$0xff] %vm711, %v1002
      %v1005 = vld [vmem:[#allocation2] sm:$0xff]
      %v1006 = vld [vmem:[#allocation2 + $0x8] sm:$0xff]
      %vm1007 = vcmp.gt.f32.partialorder %v1005, 0.0
      %vm1008 = vcmp.gt.f32.partialorder %v1006, 0.0
      %v1009 = vsel %vm1007, %v1005, 1.0
      %v1010 = vsel %vm1008, %v1006, 1.0
      %v1011 = vld [vmem:[#allocation3] sm:$0xff]
      %v1012 = vld [vmem:[#allocation3 + $0x8] sm:$0xff]
      %1014 = vset.pattern.permute.xlu0 3
      %1015 = vperm.xlu0 %1014, %v1009
      %v1016 = vpop.permute.xlu0 %1015
      %1019 = vset.pattern.permute.xlu0 3
      %1020 = vperm.xlu0 %1019, %v1010
      %v1021 = vpop.permute.xlu0 %1020
      %v1023 = vrcp.pop %v1016
      %v1024 = vmul.f32 %v1011, %v1023
      %v1025 = vrcp.pop %v1021
      %v1026 = vmul.f32 %v1012, %v1025
      %1027 = vst.msk [vmem:[#allocation10] sm:$0xff] %vm927, %v1024
      %1028 = vst.msk [vmem:[#allocation10 + $0x8] sm:$0xff] %vm927, %v1026
    $region37: #{tpu_custom_call.1} parent=1 // pred_fallthru
      _
    // Predicated region
    $region38: #{tpu_custom_call.1} parent=1 // pred_check
      _
    $region39: #{tpu_custom_call.1} parent=1 // pred_check_branch
      %1030 = sbr.rel (0) target = $region41
    $region40: #{tpu_custom_call.1} parent=1 // pred_region
      %s1032 = ssub.s32 256, 256
      %1033 = vsyncadd [#allocation6], %s1032
      %s1034 = sshll.u32 [#allocation10], 4
      %s1035 = int_to_ptr.vmem [resolvable:$true] %s1034
      %1040 = dma.vmem_to_hbm [thread:$0]  %s1035, 256, %s4, [#allocation6], 128, 128, 8
    $region41: #{tpu_custom_call.1} parent=1 // pred_fallthru
      _
    // Predicated region
    $region42: #{tpu_custom_call.1} parent=1 // pred_check
      _
    $region43: #{tpu_custom_call.1} parent=1 // pred_check_branch
      %1042 = sbr.rel (0) target = $region45
    $region44: #{tpu_custom_call.1} parent=1 // pred_region
      %1043 = dma.done [#allocation6], 256
    $region45: #{tpu_custom_call.1} parent=1 // pred_fallthru
      _
    %1044 = vsyncpa [#allocation5], 1
    %1045 = vsyncpa [#allocation8], 1
    %1046 = vsyncpa [#allocation6], 1

</llo_original>
